<compile_context>
chip_gen: v7x
topology: tpu7x:2x2x1
jax: 0.10.0
libtpu: 0.0.40
codegen_flags: <defaults>
</compile_context>

<pallas_src>
import functools

import jax
import jax.numpy as jnp
from jax.experimental import pallas as pl
from jax.experimental.pallas import tpu as pltpu


def _maxout_kernel(x_ref, o_ref, *, pool_size, hw):
    # x_ref: (R, pool_size * hw) block in VMEM; hw is a multiple of 128 so
    # every slice below is lane-aligned. Pure VPU maxima, no sublane reduce.
    m = x_ref[:, 0:hw]
    for p in range(1, pool_size):
        m = jnp.maximum(m, x_ref[:, p * hw:(p + 1) * hw])
    o_ref[...] = m


def _choose_rows_per_block(total_rows, row_bytes, vmem_budget_bytes, sublane):
    """Pick R (rows per grid step): multiple of `sublane`, few-MiB working set."""
    if total_rows <= sublane:
        return total_rows  # full extent along the row axis (always legal)
    max_r = max(sublane, vmem_budget_bytes // (2 * row_bytes))  # 2x: double buffer
    r = min(total_rows, max_r)
    # Keep at least 2 grid steps so a parallel axis can shard across v7x's 2 TCs.
    if r >= total_rows and total_rows >= 2 * sublane:
        r = total_rows // 2
    r = max(sublane, (r // sublane) * sublane)
    return r


def maxout(x: jax.Array, pool_size: int = 4) -> jax.Array:
    """Pallas Maxout over the channel dimension of an NCHW tensor."""
    N, C, H, W = x.shape
    assert C % pool_size == 0, (
        f"Wrong input channel dim size ({C}) for Maxout({pool_size})"
    )
    G = C // pool_size
    HW = H * W
    rows = N * G

    # Pad the spatial (lane) axis up to a multiple of 128 for dense stores/DMA.
    HW_pad = ((HW + 127) // 128) * 128
    x3 = x.reshape(rows, pool_size, HW)
    if HW_pad != HW:
        x3 = jnp.pad(x3, ((0, 0), (0, 0), (0, HW_pad - HW)))
    x2 = x3.reshape(rows, pool_size * HW_pad)

    itemsize = jnp.dtype(x.dtype).itemsize
    # Sublane packing: 8 rows per vreg for 32-bit, 16 for 16-bit, 32 for 8-bit.
    sublane = 8 * max(1, 4 // itemsize)
    # Per-row bytes of (input + output) data touched in VMEM.
    row_bytes = (pool_size + 1) * HW_pad * itemsize
    # Target ~12 MiB double-buffered working set: fits every generation
    # (v5e 16 MiB scoped default, v7x 64 MiB physical) while amortizing the
    # ~0.35 us per-grid-step overhead.
    R = _choose_rows_per_block(rows, row_bytes, 12 * 1024 * 1024, sublane)

    grid = (pl.cdiv(rows, R),)

    out2 = pl.pallas_call(
        functools.partial(_maxout_kernel, pool_size=pool_size, hw=HW_pad),
        out_shape=jax.ShapeDtypeStruct((rows, HW_pad), x.dtype),
        grid_spec=pltpu.PrefetchScalarGridSpec(
            num_scalar_prefetch=0,
            grid=grid,
            in_specs=[
                pl.BlockSpec((R, pool_size * HW_pad), lambda i: (i, 0)),
            ],
            out_specs=pl.BlockSpec((R, HW_pad), lambda i: (i, 0)),
        ),
        compiler_params=pltpu.CompilerParams(
            dimension_semantics=("parallel",),
            vmem_limit_bytes=32 * 1024 * 1024,
        ),
    )(x2)

    y = out2[:, :HW].reshape(N, G, H, W)
    # torch.squeeze(m, dim=2): only removes dim 2 if it is size 1.
    if y.shape[2] == 1:
        y = jnp.squeeze(y, axis=2)
    return y


def maxout_ref(x: jax.Array, pool_size: int = 4) -> jax.Array:
    """Pure-JAX reference matching the PyTorch forward."""
    N, C, H, W = x.shape
    y = x.reshape(N, C // pool_size, pool_size, H, W).max(axis=2)
    if y.shape[2] == 1:
        y = jnp.squeeze(y, axis=2)
    return y


if __name__ == "__main__":
    key = jax.random.PRNGKey(0)
    pool_size = 4

    # Main test: lane-aligned spatial dim (HW = 256).
    N, C, H, W = 2, 16, 16, 16
    x = jax.random.normal(key, (N, C, H, W), dtype=jnp.float32)
    y = jax.block_until_ready(maxout(x, pool_size=pool_size))
    y_ref = maxout_ref(x, pool_size=pool_size)
    assert y.shape == y_ref.shape, (y.shape, y_ref.shape)
    assert jnp.allclose(y, y_ref), "Pallas Maxout mismatch vs reference"

    # Secondary test: ragged spatial dim (HW = 49 -> padded to 128 internally).
    key2 = jax.random.PRNGKey(1)
    x2 = jax.random.normal(key2, (2, 8, 7, 7), dtype=jnp.float32)
    y2 = jax.block_until_ready(maxout(x2, pool_size=pool_size))
    y2_ref = maxout_ref(x2, pool_size=pool_size)
    assert y2.shape == y2_ref.shape, (y2.shape, y2_ref.shape)
    assert jnp.allclose(y2, y2_ref), "Pallas Maxout mismatch vs reference (padded)"

    print("KERNEL_OK")
</pallas_src>

<mosaic_0001>
module attributes {stable_mosaic.version = 11 : i64} {
  func.func @_maxout_kernel(%arg0: i32, %arg1: memref<8x1024xf32, #tpu.memory_space<vmem>>, %arg2: memref<8x256xf32, #tpu.memory_space<vmem>>) attributes {dimension_semantics = [#tpu.dimension_semantics<parallel>], iteration_bounds = array<i64: 1>, scalar_prefetch = 0 : i64, scratch_operands = 0 : i64, tpu.core_type = #tpu.core_type<tc>, window_params = [{transform_indices = @transform_0, window_bounds = array<i64: 8, 1024>}, {transform_indices = @transform_1, window_bounds = array<i64: 8, 256>}]} {
    %c0 = arith.constant 0 : index
    %c0_0 = arith.constant 0 : index
    %0 = vector.load %arg1[%c0, %c0_0] : memref<8x1024xf32, #tpu.memory_space<vmem>>, vector<8x256xf32>
    %c0_1 = arith.constant 0 : index
    %c256 = arith.constant 256 : index
    %1 = vector.load %arg1[%c0_1, %c256] : memref<8x1024xf32, #tpu.memory_space<vmem>>, vector<8x256xf32>
    %2 = arith.maximumf %0, %1 : vector<8x256xf32>
    %c0_2 = arith.constant 0 : index
    %c512 = arith.constant 512 : index
    %3 = vector.load %arg1[%c0_2, %c512] : memref<8x1024xf32, #tpu.memory_space<vmem>>, vector<8x256xf32>
    %4 = arith.maximumf %2, %3 : vector<8x256xf32>
    %c0_3 = arith.constant 0 : index
    %c768 = arith.constant 768 : index
    %5 = vector.load %arg1[%c0_3, %c768] : memref<8x1024xf32, #tpu.memory_space<vmem>>, vector<8x256xf32>
    %6 = arith.maximumf %4, %5 : vector<8x256xf32>
    %c0_4 = arith.constant 0 : index
    %c0_5 = arith.constant 0 : index
    %7 = vector.load %arg2[%c0_4, %c0_5] : memref<8x256xf32, #tpu.memory_space<vmem>>, vector<8x256xf32>
    tpu.vector_store %arg2[%c0_4, %c0_5], %6 {strides = array<i32>} : memref<8x256xf32, #tpu.memory_space<vmem>>, vector<8x256xf32>,
    return
  }
  func.func @transform_0(%arg0: i32) -> (i32, i32) {
    %c0_i32 = arith.constant 0 : i32
    %c0_i32_0 = arith.constant 0 : i32
    return %arg0, %c0_i32 : i32, i32
  }
  func.func @transform_1(%arg0: i32) -> (i32, i32) {
    %c0_i32 = arith.constant 0 : i32
    %c0_i32_0 = arith.constant 0 : i32
    return %arg0, %c0_i32 : i32, i32
  }
}

</mosaic_0001>

<llo_original>
// kernel: tpu_custom_call.1
$region0: #{tpu_custom_call.1}
  #allocation0 [shape = 'u32[]', space=smem, size = 0x4, offset = 0x4, fixed_abs, tag = 'smem constant byte address 0x4 - core index']
  #allocation1 [shape = 'u32[144,128]{1,0:T(1,128)}', space=vmem, size = 0x12000, scoped, tag = 'internal scratch']
  %s0 = inlined_call_operand.hbm [shape: f32[8,1024], index: 0, kind: input, shape index: {}]
  %s1 = inlined_call_operand.hbm [shape: f32[8,256], index: 1, kind: output, shape index: {}]
  %s2 = sld [smem:[#allocation0]]
  $region18: #{tpu_custom_call.1} parent=0
    _
  %s4 = ssub.s32 1, %s2
  %s5 = scalar_select 0, %s4, %s2
  $region1: #{tpu_custom_call.1} parent=0
    #allocation2 [shape = 'u8[32768]{0}', space=vmem, size = 0x8000, scoped, tag = 'input window, operand 0, single buffered']
    #allocation3 [shape = 's32[1]{0}', space=sflag, size = 0x4, scoped, tag = 'scoped memory for tpu_custom_call.1']
    #allocation4 [shape = 's32[1]{0}', space=sflag, size = 0x4, scoped, tag = 'scoped memory for tpu_custom_call.1']
    #allocation5 [shape = 'u8[8192]{0}', space=vmem, size = 0x2000, scoped, tag = 'output window, operand 0, single buffered']
    %6 = vsyncpa [#allocation3], 0
    %7 = vsyncpa [#allocation4], 0
    // Predicated region
    $region2: #{tpu_custom_call.1} parent=1 // pred_check
      _
    $region3: #{tpu_custom_call.1} parent=1 // pred_check_branch
      %9 = sbr.rel (0) target = $region5
    $region4: #{tpu_custom_call.1} parent=1 // pred_region
      %s11 = ssub.s32 1024, 1024
      %12 = vsyncadd [#allocation3], %s11
      %s14 = sshll.u32 [#allocation2], 4
      %s15 = int_to_ptr.vmem [resolvable:$true] %s14
      %17 = dma.hbm_to_vmem [thread:$0]  %s0, 1024, %s15, [#allocation3]
    $region5: #{tpu_custom_call.1} parent=1 // pred_fallthru
      _
    // Predicated region
    $region6: #{tpu_custom_call.1} parent=1 // pred_check
      _
    $region7: #{tpu_custom_call.1} parent=1 // pred_check_branch
      %19 = sbr.rel (0) target = $region9
    $region8: #{tpu_custom_call.1} parent=1 // pred_region
      %20 = dma.done [#allocation3], 1024
    $region9: #{tpu_custom_call.1} parent=1 // pred_fallthru
      _
    %v21 = vld [vmem:[#allocation2] sm:$0xff]
    %v22 = vld [vmem:[#allocation2 + $0x8] sm:$0xff]
    %v23 = vld [vmem:[#allocation2 + $0x10] sm:$0xff]
    %v24 = vld [vmem:[#allocation2 + $0x18] sm:$0xff]
    %v25 = vmax.f32 %v21, %v23
    %v26 = vmax.f32 %v22, %v24
    %v27 = vld [vmem:[#allocation2 + $0x20] sm:$0xff]
    %v28 = vld [vmem:[#allocation2 + $0x28] sm:$0xff]
    %v29 = vmax.f32 %v25, %v27
    %v30 = vmax.f32 %v26, %v28
    %v31 = vld [vmem:[#allocation2 + $0x30] sm:$0xff]
    %v32 = vld [vmem:[#allocation2 + $0x38] sm:$0xff]
    %v33 = vmax.f32 %v29, %v31
    %v34 = vmax.f32 %v30, %v32
    %35 = vst [vmem:[#allocation5] sm:$0xff] %v33
    %36 = vst [vmem:[#allocation5 + $0x8] sm:$0xff] %v34
    // Predicated region
    $region10: #{tpu_custom_call.1} parent=1 // pred_check
      _
    $region11: #{tpu_custom_call.1} parent=1 // pred_check_branch
      %38 = sbr.rel (0) target = $region13
    $region12: #{tpu_custom_call.1} parent=1 // pred_region
      %s40 = ssub.s32 256, 256
      %41 = vsyncadd [#allocation4], %s40
      %s43 = sshll.u32 [#allocation5], 4
      %s44 = int_to_ptr.vmem [resolvable:$true] %s43
      %46 = dma.vmem_to_hbm [thread:$0]  %s44, 256, %s1, [#allocation4]
    $region13: #{tpu_custom_call.1} parent=1 // pred_fallthru
      _
    // Predicated region
    $region14: #{tpu_custom_call.1} parent=1 // pred_check
      _
    $region15: #{tpu_custom_call.1} parent=1 // pred_check_branch
      %48 = sbr.rel (0) target = $region17
    $region16: #{tpu_custom_call.1} parent=1 // pred_region
      %49 = dma.done [#allocation4], 256
    $region17: #{tpu_custom_call.1} parent=1 // pred_fallthru
      _
    %50 = vsyncpa [#allocation3], 1
    %51 = vsyncpa [#allocation4], 1

</llo_original>
